<compile_context>
chip_gen: v7x
topology: tpu7x:2x2x1
jax: 0.10.0
libtpu: 0.0.40
codegen_flags: <defaults>
</compile_context>

<pallas_src>
import jax
import jax.numpy as jnp
from jax.experimental import pallas as pl
from jax.experimental.pallas import tpu as pltpu

GAMMA = 1.5   # the ad*sqrt(ad) specialization below is only valid for 1.5
ALPHA = 0.25
_LANES = 128


def _vfl_kernel(pred_ref, true_ref, out_ref):
    x = pred_ref[...]
    y = true_ref[...]

    # Shared transcendental: e = exp(-|x|).
    e = jnp.exp(-jnp.abs(x))

    # Numerically stable BCE-with-logits: max(x,0) - x*y + log1p(exp(-|x|)).
    bce = jnp.maximum(x, 0.0) - x * y + jnp.log1p(e)

    # sigmoid(x) reusing e:  x >= 0 -> 1/(1+e);  x < 0 -> e/(1+e).
    inv = 1.0 / (1.0 + e)  # exact reciprocal to hold 1e-5 agreement with torch
    pred_prob = jnp.where(x >= 0.0, inv, e * inv)

    # |p - y| ** 1.5  ==  ad * sqrt(ad)   (gamma == 1.5 only; sqrt(0) == 0)
    ad = jnp.abs(pred_prob - y)
    ad_pow = ad * jnp.sqrt(ad)

    # varifocal weight: y where y > 0, else alpha * |p - y|^gamma
    vf_weight = jnp.where(y > 0.0, y, ALPHA * ad_pow)

    out_ref[...] = (bce * vf_weight).astype(out_ref.dtype)


def varifocal_loss(pred, true, *, block_rows=2048):
    """pred, true: float32 arrays of identical shape (e.g. NCHW).
    Returns the elementwise VariFocal loss with the same shape/dtype."""
    assert pred.shape == true.shape
    orig_shape = pred.shape
    orig_dtype = pred.dtype
    total = pred.size

    rows = pl.cdiv(total, _LANES)
    # Clamp the tile so tiny inputs don't allocate a huge padded slab, but
    # keep the (8, 128) alignment. 2048x128 f32 = 1 MiB/block -> ~6 MiB live
    # with double-buffered in/in/out: safe on v5e/v6e/v7x scoped-VMEM defaults.
    block_rows = min(block_rows, max(8, ((rows + 7) // 8) * 8))
    padded_rows = pl.cdiv(rows, block_rows) * block_rows
    padded_total = padded_rows * _LANES

    pred_flat = jnp.pad(pred.reshape(-1), (0, padded_total - total))
    true_flat = jnp.pad(true.reshape(-1), (0, padded_total - total))
    pred2d = pred_flat.reshape(padded_rows, _LANES)
    true2d = true_flat.reshape(padded_rows, _LANES)

    spec = pl.BlockSpec((block_rows, _LANES), lambda i: (i, 0))
    out2d = pl.pallas_call(
        _vfl_kernel,
        out_shape=jax.ShapeDtypeStruct((padded_rows, _LANES), orig_dtype),
        grid=(padded_rows // block_rows,),
        in_specs=[spec, spec],
        out_specs=spec,
        compiler_params=pltpu.CompilerParams(
            dimension_semantics=("parallel",),  # shards across v7x's 2 TCs
        ),
    )(pred2d, true2d)

    return out2d.reshape(-1)[:total].reshape(orig_shape)


def _varifocal_loss_ref(pred, true):
    x = pred.astype(jnp.float32)
    y = true.astype(jnp.float32)
    bce = jnp.maximum(x, 0.0) - x * y + jnp.log1p(jnp.exp(-jnp.abs(x)))
    p = jax.nn.sigmoid(x)
    w = y * (y > 0.0).astype(jnp.float32) + ALPHA * jnp.abs(p - y) ** GAMMA * (
        y <= 0.0
    ).astype(jnp.float32)
    return bce * w


if __name__ == "__main__":
    key = jax.random.PRNGKey(0)
    k1, k2, k3, k4 = jax.random.split(key, 4)

    # Case 1: NCHW, total a multiple of 128 (batch=2, channels=4, 16x16).
    shape1 = (2, 4, 16, 16)
    pred1 = jax.random.normal(k1, shape1, dtype=jnp.float32) * 2.0
    raw1 = jax.random.uniform(k2, shape1, dtype=jnp.float32)
    true1 = jnp.where(raw1 > 0.6, raw1, 0.0)

    out1 = jax.block_until_ready(varifocal_loss(pred1, true1))
    ref1 = _varifocal_loss_ref(pred1, true1)
    assert out1.shape == shape1 and out1.dtype == jnp.float32
    assert jnp.allclose(out1, ref1, atol=1e-5, rtol=1e-5)

    # Case 2: ragged size (not a multiple of 128) to exercise the pad path.
    shape2 = (2, 3, 13, 17)
    pred2 = jax.random.normal(k3, shape2, dtype=jnp.float32) * 2.0
    raw2 = jax.random.uniform(k4, shape2, dtype=jnp.float32)
    true2 = jnp.where(raw2 > 0.6, raw2, 0.0)

    out2 = jax.block_until_ready(varifocal_loss(pred2, true2))
    ref2 = _varifocal_loss_ref(pred2, true2)
    assert out2.shape == shape2 and out2.dtype == jnp.float32
    assert jnp.allclose(out2, ref2, atol=1e-5, rtol=1e-5)

    print("KERNEL_OK")
</pallas_src>

<mosaic_0001>
module attributes {stable_mosaic.version = 11 : i64} {
  func.func @_vfl_kernel(%arg0: i32, %arg1: memref<16x128xf32, #tpu.memory_space<vmem>>, %arg2: memref<16x128xf32, #tpu.memory_space<vmem>>, %arg3: memref<16x128xf32, #tpu.memory_space<vmem>>) attributes {dimension_semantics = [#tpu.dimension_semantics<parallel>], iteration_bounds = array<i64: 1>, scalar_prefetch = 0 : i64, scratch_operands = 0 : i64, tpu.core_type = #tpu.core_type<tc>, window_params = [{transform_indices = @transform_0, window_bounds = array<i64: 16, 128>}, {transform_indices = @transform_1, window_bounds = array<i64: 16, 128>}, {transform_indices = @transform_2, window_bounds = array<i64: 16, 128>}]} {
    %c0 = arith.constant 0 : index
    %c0_0 = arith.constant 0 : index
    %0 = vector.load %arg1[%c0, %c0_0] : memref<16x128xf32, #tpu.memory_space<vmem>>, vector<16x128xf32>
    %c0_1 = arith.constant 0 : index
    %c0_2 = arith.constant 0 : index
    %1 = vector.load %arg2[%c0_1, %c0_2] : memref<16x128xf32, #tpu.memory_space<vmem>>, vector<16x128xf32>
    %2 = math.absf %0 : vector<16x128xf32>
    %cst = arith.constant 0.000000e+00 : f32
    %3 = vector.broadcast %cst : f32 to vector<16x128xf32>
    %4 = arith.subf %3, %2 : vector<16x128xf32>
    %5 = math.exp %4 : vector<16x128xf32>
    %cst_3 = arith.constant 0.000000e+00 : f32
    %6 = vector.broadcast %cst_3 : f32 to vector<16x128xf32>
    %7 = arith.maximumf %0, %6 : vector<16x128xf32>
    %8 = arith.mulf %0, %1 : vector<16x128xf32>
    %9 = arith.subf %7, %8 : vector<16x128xf32>
    %10 = math.log1p %5 : vector<16x128xf32>
    %11 = arith.addf %9, %10 : vector<16x128xf32>
    %cst_4 = arith.constant 1.000000e+00 : f32
    %12 = vector.broadcast %cst_4 : f32 to vector<16x128xf32>
    %13 = arith.addf %12, %5 : vector<16x128xf32>
    %cst_5 = arith.constant 1.000000e+00 : f32
    %14 = vector.broadcast %cst_5 : f32 to vector<16x128xf32>
    %15 = arith.divf %14, %13 : vector<16x128xf32>
    %cst_6 = arith.constant 0.000000e+00 : f32
    %16 = vector.broadcast %cst_6 : f32 to vector<16x128xf32>
    %17 = arith.cmpf oge, %0, %16 : vector<16x128xf32>
    %18 = arith.mulf %5, %15 : vector<16x128xf32>
    %19 = arith.select %17, %15, %18 : vector<16x128xi1>, vector<16x128xf32>
    %20 = arith.subf %19, %1 : vector<16x128xf32>
    %21 = math.absf %20 : vector<16x128xf32>
    %22 = math.sqrt %21 : vector<16x128xf32>
    %23 = arith.mulf %21, %22 : vector<16x128xf32>
    %cst_7 = arith.constant 0.000000e+00 : f32
    %24 = vector.broadcast %cst_7 : f32 to vector<16x128xf32>
    %25 = arith.cmpf ogt, %1, %24 : vector<16x128xf32>
    %cst_8 = arith.constant 2.500000e-01 : f32
    %26 = vector.broadcast %cst_8 : f32 to vector<16x128xf32>
    %27 = arith.mulf %26, %23 : vector<16x128xf32>
    %28 = arith.select %25, %1, %27 : vector<16x128xi1>, vector<16x128xf32>
    %29 = arith.mulf %11, %28 : vector<16x128xf32>
    %c0_9 = arith.constant 0 : index
    %c0_10 = arith.constant 0 : index
    %30 = vector.load %arg3[%c0_9, %c0_10] : memref<16x128xf32, #tpu.memory_space<vmem>>, vector<16x128xf32>
    tpu.vector_store %arg3[%c0_9, %c0_10], %29 {strides = array<i32>} : memref<16x128xf32, #tpu.memory_space<vmem>>, vector<16x128xf32>,
    return
  }
  func.func @transform_0(%arg0: i32) -> (i32, i32) {
    %c0_i32 = arith.constant 0 : i32
    %c0_i32_0 = arith.constant 0 : i32
    return %arg0, %c0_i32 : i32, i32
  }
  func.func @transform_1(%arg0: i32) -> (i32, i32) {
    %c0_i32 = arith.constant 0 : i32
    %c0_i32_0 = arith.constant 0 : i32
    return %arg0, %c0_i32 : i32, i32
  }
  func.func @transform_2(%arg0: i32) -> (i32, i32) {
    %c0_i32 = arith.constant 0 : i32
    %c0_i32_0 = arith.constant 0 : i32
    return %arg0, %c0_i32 : i32, i32
  }
}

</mosaic_0001>

<llo_original>
// kernel: tpu_custom_call.1
$region0: #{tpu_custom_call.1}
  #allocation0 [shape = 'u32[]', space=smem, size = 0x4, offset = 0x4, fixed_abs, tag = 'smem constant byte address 0x4 - core index']
  #allocation1 [shape = 'u32[144,128]{1,0:T(1,128)}', space=vmem, size = 0x12000, scoped, tag = 'internal scratch']
  %s0 = inlined_call_operand.hbm [shape: f32[16,128], index: 0, kind: input, shape index: {}]
  %s1 = inlined_call_operand.hbm [shape: f32[16,128], index: 1, kind: input, shape index: {}]
  %s2 = inlined_call_operand.hbm [shape: f32[16,128], index: 2, kind: output, shape index: {}]
  %s3 = sld [smem:[#allocation0]]
  $region26: #{tpu_custom_call.1} parent=0
    _
  %s5 = ssub.s32 1, %s3
  %s6 = scalar_select 0, %s5, %s3
  $region1: #{tpu_custom_call.1} parent=0
    #allocation2 [shape = 'u8[8192]{0}', space=vmem, size = 0x2000, scoped, tag = 'input window, operand 0, single buffered']
    #allocation3 [shape = 's32[1]{0}', space=sflag, size = 0x4, scoped, tag = 'scoped memory for tpu_custom_call.1']
    #allocation4 [shape = 's32[1]{0}', space=sflag, size = 0x4, scoped, tag = 'scoped memory for tpu_custom_call.1']
    #allocation5 [shape = 'u8[8192]{0}', space=vmem, size = 0x2000, scoped, tag = 'input window, operand 1, single buffered']
    #allocation6 [shape = 's32[1]{0}', space=sflag, size = 0x4, scoped, tag = 'scoped memory for tpu_custom_call.1']
    #allocation7 [shape = 'u8[8192]{0}', space=vmem, size = 0x2000, scoped, tag = 'output window, operand 0, single buffered']
    %7 = vsyncpa [#allocation3], 0
    %8 = vsyncpa [#allocation6], 0
    %9 = vsyncpa [#allocation4], 0
    // Predicated region
    $region2: #{tpu_custom_call.1} parent=1 // pred_check
      _
    $region3: #{tpu_custom_call.1} parent=1 // pred_check_branch
      %11 = sbr.rel (0) target = $region5
    $region4: #{tpu_custom_call.1} parent=1 // pred_region
      %s13 = ssub.s32 256, 256
      %14 = vsyncadd [#allocation3], %s13
      %s15 = sshll.u32 [#allocation2], 4
      %s16 = int_to_ptr.vmem [resolvable:$true] %s15
      %21 = dma.hbm_to_vmem [thread:$0]  %s0, 256, %s16, [#allocation3], 128, 128, 8
    $region5: #{tpu_custom_call.1} parent=1 // pred_fallthru
      _
    // Predicated region
    $region6: #{tpu_custom_call.1} parent=1 // pred_check
      _
    $region7: #{tpu_custom_call.1} parent=1 // pred_check_branch
      %23 = sbr.rel (0) target = $region9
    $region8: #{tpu_custom_call.1} parent=1 // pred_region
      %s25 = ssub.s32 256, 256
      %26 = vsyncadd [#allocation6], %s25
      %s27 = sshll.u32 [#allocation5], 4
      %s28 = int_to_ptr.vmem [resolvable:$true] %s27
      %33 = dma.hbm_to_vmem [thread:$0]  %s1, 256, %s28, [#allocation6], 128, 128, 8
    $region9: #{tpu_custom_call.1} parent=1 // pred_fallthru
      _
    // Predicated region
    $region10: #{tpu_custom_call.1} parent=1 // pred_check
      _
    $region11: #{tpu_custom_call.1} parent=1 // pred_check_branch
      %35 = sbr.rel (0) target = $region13
    $region12: #{tpu_custom_call.1} parent=1 // pred_region
      %36 = dma.done [#allocation3], 256
    $region13: #{tpu_custom_call.1} parent=1 // pred_fallthru
      _
    // Predicated region
    $region14: #{tpu_custom_call.1} parent=1 // pred_check
      _
    $region15: #{tpu_custom_call.1} parent=1 // pred_check_branch
      %38 = sbr.rel (0) target = $region17
    $region16: #{tpu_custom_call.1} parent=1 // pred_region
      %39 = dma.done [#allocation6], 256
    $region17: #{tpu_custom_call.1} parent=1 // pred_fallthru
      _
    %v40 = vld [vmem:[#allocation2] sm:$0xff]
    %v41 = vld [vmem:[#allocation2 + $0x8] sm:$0xff]
    %v42 = vld [vmem:[#allocation5] sm:$0xff]
    %v43 = vld [vmem:[#allocation5 + $0x8] sm:$0xff]
    %v44 = vand.u32 2147483647, %v40
    %v45 = vand.u32 2147483647, %v41
    %v46 = vsub.f32 0.0, %v44
    %v47 = vsub.f32 0.0, %v45
    %v48 = vmul.f32 %v46, 1.442695
    %v49 = vpow.pop %v48
    %v50 = vmul.f32 %v47, 1.442695
    %v51 = vpow.pop %v50
    %v52 = vmax.f32 %v40, 0.0
    %v53 = vmax.f32 %v41, 0.0
    %v54 = vmul.f32 %v40, %v42
    %v55 = vmul.f32 %v41, %v43
    %v56 = vsub.f32 %v52, %v54
    %v57 = vsub.f32 %v53, %v55
    %v58 = vadd.f32 %v49, 1.0
    %v59 = vlog2.pop %v58
    %v60 = vmul.f32 %v59, 0.6931472
    %v61 = vmul.f32 -0.5, %v49
    %v62 = vadd.f32 %v61, 1.0
    %v63 = vmul.f32 %v62, %v49
    %v64 = vand.u32 2147483647, %v49
    %vm65 = vcmp.lt.f32.partialorder %v64, 0.0004427343
    %v66 = vsel %vm65, %v63, %v60
    %v67 = vadd.f32 %v51, 1.0
    %v68 = vlog2.pop %v67
    %v69 = vmul.f32 %v68, 0.6931472
    %v70 = vmul.f32 -0.5, %v51
    %v71 = vadd.f32 %v70, 1.0
    %v72 = vmul.f32 %v71, %v51
    %v73 = vand.u32 2147483647, %v51
    %vm74 = vcmp.lt.f32.partialorder %v73, 0.0004427343
    %v75 = vsel %vm74, %v72, %v69
    %v76 = vadd.f32 %v56, %v66
    %v77 = vadd.f32 %v57, %v75
    %v78 = vadd.f32 %v49, 1.0
    %v79 = vadd.f32 %v51, 1.0
    %v80 = vrcp.pop %v78
    %v81 = vmul.f32 1.0, %v80
    %v82 = vrcp.pop %v79
    %v83 = vmul.f32 1.0, %v82
    %vm84 = vcmp.ge.f32.partialorder %v40, 0.0
    %vm85 = vcmp.ge.f32.partialorder %v41, 0.0
    %v86 = vmul.f32 %v49, %v81
    %v87 = vmul.f32 %v51, %v83
    %v88 = vsel %vm84, %v81, %v86
    %v89 = vsel %vm85, %v83, %v87
    %v90 = vsub.f32 %v88, %v42
    %v91 = vsub.f32 %v89, %v43
    %v92 = vand.u32 2147483647, %v90
    %v93 = vand.u32 2147483647, %v91
    %v94 = vrsqrt.pop %v92
    %v95 = vmul.f32 %v92, %v94
    %vm96 = vcmp.eq.f32.partialorder %v92, inf
    %v97 = vsel %vm96, %v92, %v95
    %vm98 = vcmp.eq.f32.partialorder %v92, 0.0
    %v99 = vand.u32 %v92, 2147483648
    %v100 = vsel %vm98, %v99, %v97
    %v101 = vrsqrt.pop %v93
    %v102 = vmul.f32 %v93, %v101
    %vm103 = vcmp.eq.f32.partialorder %v93, inf
    %v104 = vsel %vm103, %v93, %v102
    %vm105 = vcmp.eq.f32.partialorder %v93, 0.0
    %v106 = vand.u32 %v93, 2147483648
    %v107 = vsel %vm105, %v106, %v104
    %v108 = vmul.f32 %v92, %v100
    %v109 = vmul.f32 %v93, %v107
    %vm110 = vcmp.gt.f32.partialorder %v42, 0.0
    %vm111 = vcmp.gt.f32.partialorder %v43, 0.0
    %v112 = vmul.f32 %v108, 0.25
    %v113 = vmul.f32 %v109, 0.25
    %v114 = vsel %vm110, %v42, %v112
    %v115 = vsel %vm111, %v43, %v113
    %v116 = vmul.f32 %v76, %v114
    %v117 = vmul.f32 %v77, %v115
    %118 = vst [vmem:[#allocation7] sm:$0xff] %v116
    %119 = vst [vmem:[#allocation7 + $0x8] sm:$0xff] %v117
    // Predicated region
    $region18: #{tpu_custom_call.1} parent=1 // pred_check
      _
    $region19: #{tpu_custom_call.1} parent=1 // pred_check_branch
      %121 = sbr.rel (0) target = $region21
    $region20: #{tpu_custom_call.1} parent=1 // pred_region
      %s123 = ssub.s32 256, 256
      %124 = vsyncadd [#allocation4], %s123
      %s125 = sshll.u32 [#allocation7], 4
      %s126 = int_to_ptr.vmem [resolvable:$true] %s125
      %131 = dma.vmem_to_hbm [thread:$0]  %s126, 256, %s2, [#allocation4], 128, 128, 8
    $region21: #{tpu_custom_call.1} parent=1 // pred_fallthru
      _
    // Predicated region
    $region22: #{tpu_custom_call.1} parent=1 // pred_check
      _
    $region23: #{tpu_custom_call.1} parent=1 // pred_check_branch
      %133 = sbr.rel (0) target = $region25
    $region24: #{tpu_custom_call.1} parent=1 // pred_region
      %134 = dma.done [#allocation4], 256
    $region25: #{tpu_custom_call.1} parent=1 // pred_fallthru
      _
    %135 = vsyncpa [#allocation3], 1
    %136 = vsyncpa [#allocation6], 1
    %137 = vsyncpa [#allocation4], 1

</llo_original>
